<compile_context>
chip_gen: v7x
topology: tpu7x:2x2x1
jax: 0.10.0
libtpu: 0.0.40
codegen_flags: <defaults>
</compile_context>

<pallas_src>
import jax
import jax.numpy as jnp
from jax import lax
from jax.experimental import pallas as pl
from jax.experimental.pallas import tpu as pltpu


def _round_up(x, m):
    return ((x + m - 1) // m) * m


# ----------------------------------------------------------------------------
# Generation-aware defaults (row-tile target, scoped VMEM limit)
# ----------------------------------------------------------------------------
def _device_tuning():
    kind = ""
    try:
        kind = jax.devices()[0].device_kind.lower()
    except Exception:
        pass
    if ("v5" in kind) or ("v6" in kind):
        # 128 MiB physical VMEM: fatter row tiles amortize per-step overhead.
        return 256, 64 * 1024 * 1024
    # v7x (64 MiB VMEM, 2 TCs/chip) and unknown devices: conservative.
    return 128, 32 * 1024 * 1024


# ----------------------------------------------------------------------------
# Tile selection
# ----------------------------------------------------------------------------
def _choose_tiles(H, W, Cout_pad, target_rows, y_budget_bytes=8 * 1024 * 1024):
    """Pick (row tile TR, halo block lanes BH) so every BlockSpec is lane aligned.

    Requirements:
      * TR % 8 == 0
      * (TR * W) % BH == 0   (halo block index (r+1)*TRW/BH is exact; BH is a
                              128-multiple, so this also gives TRW % 128 == 0)
      * BH covers the 2 halo rows plus the furthest tap offset (2*W + 1).
      * The (9*Cout_pad, TRW + BH) f32 matmul intermediate stays within a
        modest VMEM budget.
    """
    BH = 128 * ((2 * W + 1 + 127) // 128)
    base = 8
    while (base * W) % BH != 0:
        base += 8
    rows_vmem = max(base, (y_budget_bytes // (9 * Cout_pad * 4 * W)) // base * base)
    rows = min(target_rows, rows_vmem)
    mult = max(1, min(rows, H) // base)
    TR = base * mult
    TR = min(TR, base * ((H + base - 1) // base))   # don't exceed padded height
    return TR, BH


# ----------------------------------------------------------------------------
# Pallas kernel: single fused MXU dot + f32 shift/mask/sum epilogue + bias+ReLU
# ----------------------------------------------------------------------------
def _make_stem_kernel(C, Cout, Cout_pad, W, TR, BH):
    TRW = TR * W

    def kernel(xm_ref, xh_ref, w_ref, b_ref, o_ref):
        # xm_ref: (1, C, TRW)        bf16  TR padded rows of the image (NCHW, W-flattened)
        # xh_ref: (1, C, BH)         bf16  following rows (2-row bottom halo + zero slack)
        # w_ref : (9*Cout_pad, C)    bf16  taps stacked on the OUTPUT axis, tap t = 3*kh+kw
        # b_ref : (Cout_pad, 1)      f32
        # o_ref : (1, Cout, TRW)     bf16  NCHW-ordered output rows for this tile
        xm = xm_ref[0]                                   # (C, TRW)
        xh = xh_ref[0]                                   # (C, BH)
        x_full = jnp.concatenate([xm, xh], axis=1)       # (C, TRW+BH), lane-aligned append

        # One MXU pass: every tap's channel reduction at every pixel position.
        y = jnp.dot(w_ref[...], x_full,
                    preferred_element_type=jnp.float32)  # (9*Cout_pad, TRW+BH) f32

        def tap(t, off):
            blk = y[t * Cout_pad:(t + 1) * Cout_pad]     # sublane-aligned f32 row slice
            if off < 0:
                # tap (kh=0, kw=0): shift right by one lane; the wrapped lane
                # lands on an output column-0 position, zeroed by the left-edge
                # select below.
                return pltpu.roll(blk[:, :TRW], shift=1, axis=1)
            return blk[:, off:off + TRW]                 # static lane slice

        # Group the nine taps by kw so only TWO edge selects are needed.
        g_left = tap(0, -1) + tap(3, W - 1) + tap(6, 2 * W - 1)   # kw = 0
        g_mid = tap(1, 0) + tap(4, W) + tap(7, 2 * W)             # kw = 1
        g_right = tap(2, 1) + tap(5, W + 1) + tap(8, 2 * W + 1)   # kw = 2

        # Column-edge masks built in-kernel (no resident mask input, no OOB
        # data can leak: kw=0 taps at column 0 / kw=2 taps at column W-1 read
        # the neighbouring row's edge pixel and must be zeroed, matching the
        # conv's left/right zero padding).
        col = lax.broadcasted_iota(jnp.int32, (1, TRW), 1) % W
        zero = jnp.zeros_like(g_left)
        g_left = jnp.where(jnp.broadcast_to(col != 0, g_left.shape), g_left, zero)
        g_right = jnp.where(jnp.broadcast_to(col != W - 1, g_right.shape), g_right, zero)

        acc = g_left + g_mid + g_right + b_ref[...]      # (Cout_pad, TRW) f32
        o_ref[0] = jnp.maximum(acc, 0.0)[:Cout].astype(o_ref.dtype)

    return kernel


# ----------------------------------------------------------------------------
# Wrapper: layout plumbing only (cast, pad, free reshapes)
# ----------------------------------------------------------------------------
def _stem_conv3x3_relu(x_nchw, weight_oihw, bias):
    B, C, H, W = x_nchw.shape
    Cout = weight_oihw.shape[0]
    Cout_pad = _round_up(Cout, 8)                        # keeps f32 row slices tile-aligned

    target_rows, vmem_limit = _device_tuning()
    TR, BH = _choose_tiles(H, W, Cout_pad, target_rows)
    TRW = TR * W
    H_al = _round_up(H, TR)
    nR = H_al // TR
    ratio = TRW // BH                                    # exact by construction

    # Single fused pass over the input: cast to bf16 + zero-pad H
    # (1 halo row on top; alignment rows + enough bottom rows that the last
    #  tile's halo block is fully in-bounds — no partial-OOB blocks).
    bot_rows = (H_al - H) + (BH + W - 1) // W
    xp = jnp.pad(x_nchw.astype(jnp.bfloat16), ((0, 0), (0, 0), (1, bot_rows), (0, 0)))
    x_flat = xp.reshape(B, C, xp.shape[2] * W)           # free reshape, NCHW order kept

    # OIHW -> (kh, kw, Cout, C) -> (9*Cout_pad, C); row index = (3*kh+kw)*Cout_pad + o.
    w_t = jnp.transpose(weight_oihw, (2, 3, 0, 1))
    w_t = jnp.pad(w_t, ((0, 0), (0, 0), (0, Cout_pad - Cout), (0, 0)))
    w_all = w_t.reshape(9 * Cout_pad, C).astype(jnp.bfloat16)
    b_pad = jnp.pad(bias, (0, Cout_pad - Cout)).reshape(Cout_pad, 1).astype(jnp.float32)

    kernel = _make_stem_kernel(C, Cout, Cout_pad, W, TR, BH)

    flops = 2 * 9 * C * Cout_pad * B * H_al * W
    bytes_accessed = (B * nR * (C * (TRW + BH) * 2 + 9 * Cout_pad * C * 2 + Cout_pad * 4)
                      + B * Cout * H_al * W * 2)

    out_flat = pl.pallas_call(
        kernel,
        out_shape=jax.ShapeDtypeStruct((B, Cout, H_al * W), jnp.bfloat16),
        grid_spec=pltpu.PrefetchScalarGridSpec(
            num_scalar_prefetch=0,
            grid=(B, nR),
            in_specs=[
                # main TR rows of this tile (lane-dense, contiguous DMA)
                pl.BlockSpec((1, C, TRW), lambda b, r: (b, 0, r)),
                # bottom halo: the 2 rows below the tile (plus zero slack), 128-aligned
                pl.BlockSpec((1, C, BH), lambda b, r: (b, 0, (r + 1) * ratio)),
                pl.BlockSpec((9 * Cout_pad, C), lambda b, r: (0, 0)),   # resident weights
                pl.BlockSpec((Cout_pad, 1), lambda b, r: (0, 0)),       # resident bias
            ],
            out_specs=pl.BlockSpec((1, Cout, TRW), lambda b, r: (b, 0, r)),
        ),
        compiler_params=pltpu.CompilerParams(
            # both axes independent -> megacore-shardable (B*nR >= 2 steps here)
            dimension_semantics=("parallel", "parallel"),
            vmem_limit_bytes=vmem_limit,
        ),
        cost_estimate=pl.CostEstimate(
            flops=flops, transcendentals=0, bytes_accessed=bytes_accessed),
    )(x_flat, x_flat, w_all, b_pad)

    # Free reshape back to NCHW; drop the H-alignment rows. Output stays bf16.
    return out_flat.reshape(B, Cout, H_al, W)[:, :, :H, :]


# ----------------------------------------------------------------------------
# Backbone wrapper (dict packaging + bookkeeping from the abstract class)
# ----------------------------------------------------------------------------
class PallasBackbone:
    """Concrete minimal backbone: one 3x3 stride-1 conv stem + ReLU -> {"stem": feat}."""
    # TODO(synk): Backbone.forward is abstract in the spec; this is the minimal
    # concrete stem satisfying the dict[str -> Tensor] return contract.

    def __init__(self, in_channels=4, out_channels=8, key=jax.random.PRNGKey(0)):
        kw_, kb_ = jax.random.split(key)
        self.weight = (
            jax.random.normal(kw_, (out_channels, in_channels, 3, 3), jnp.float32) * 0.1
        )
        self.bias = jax.random.normal(kb_, (out_channels,), jnp.float32) * 0.1
        self._out_features = ["stem"]
        self._out_feature_channels = {"stem": out_channels}
        self._out_feature_strides = {"stem": 1}
        self._forward = jax.jit(_stem_conv3x3_relu)

    @property
    def size_divisibility(self):
        return 0

    def output_shape(self):
        return {
            name: dict(channels=self._out_feature_channels[name],
                       stride=self._out_feature_strides[name])
            for name in self._out_features
        }

    def __call__(self, x_nchw):
        return {"stem": self._forward(x_nchw, self.weight, self.bias)}


if __name__ == "__main__":
    key = jax.random.PRNGKey(0)
    k_in, k_params = jax.random.split(key)

    # Small deterministic input, NCHW like PyTorch.
    x = jax.random.normal(k_in, (2, 4, 16, 16), jnp.float32)

    backbone = PallasBackbone(in_channels=4, out_channels=8, key=k_params)
    feats = backbone(x)
    out = jax.block_until_ready(feats["stem"])
    assert out.shape == (2, 8, 16, 16)

    # Reference conv on the same bf16-rounded inputs (f32 accumulation), then
    # rounded to bf16 to match the kernel's output dtype.
    xr = x.astype(jnp.bfloat16).astype(jnp.float32)
    wr = backbone.weight.astype(jnp.bfloat16).astype(jnp.float32)
    ref = lax.conv_general_dilated(
        xr, wr, window_strides=(1, 1), padding=((1, 1), (1, 1)),
        dimension_numbers=("NCHW", "OIHW", "NCHW"),
        precision=lax.Precision.HIGHEST)
    ref = jnp.maximum(ref + backbone.bias[None, :, None, None], 0.0)
    ref_bf16 = ref.astype(jnp.bfloat16).astype(jnp.float32)

    max_err = float(jnp.max(jnp.abs(out.astype(jnp.float32) - ref_bf16)))
    assert max_err < 2e-2, f"max abs err {max_err}"

    print("KERNEL_OK")
</pallas_src>

<mosaic_0001>
module attributes {stable_mosaic.version = 11 : i64} {
  func.func @kernel(%arg0: i32, %arg1: i32, %arg2: memref<1x4x256xbf16, #tpu.memory_space<vmem>>, %arg3: memref<1x4x128xbf16, #tpu.memory_space<vmem>>, %arg4: memref<72x4xbf16, #tpu.memory_space<vmem>>, %arg5: memref<8x1xf32, #tpu.memory_space<vmem>>, %arg6: memref<1x8x256xbf16, #tpu.memory_space<vmem>>) attributes {dimension_semantics = [#tpu.dimension_semantics<parallel>, #tpu.dimension_semantics<parallel>], iteration_bounds = array<i64: 2, 1>, scalar_prefetch = 0 : i64, scratch_operands = 0 : i64, tpu.core_type = #tpu.core_type<tc>, window_params = [{transform_indices = @transform_0, window_bounds = array<i64: 1, 4, 256>}, {transform_indices = @transform_1, window_bounds = array<i64: 1, 4, 128>}, {pipeline_mode = #tpu.pipeline_mode<synchronous>, transform_indices = @transform_2, window_bounds = array<i64: 72, 4>}, {pipeline_mode = #tpu.pipeline_mode<synchronous>, transform_indices = @transform_3, window_bounds = array<i64: 8, 1>}, {transform_indices = @transform_4, window_bounds = array<i64: 1, 8, 256>}]} {
    %c0 = arith.constant 0 : index
    %c0_0 = arith.constant 0 : index
    %c0_1 = arith.constant 0 : index
    %0 = vector.load %arg2[%c0, %c0_0, %c0_1] : memref<1x4x256xbf16, #tpu.memory_space<vmem>>, vector<1x4x256xbf16>
    %1 = vector.shape_cast %0 : vector<1x4x256xbf16> to vector<4x256xbf16>
    %c0_2 = arith.constant 0 : index
    %c0_3 = arith.constant 0 : index
    %c0_4 = arith.constant 0 : index
    %2 = vector.load %arg3[%c0_2, %c0_3, %c0_4] : memref<1x4x128xbf16, #tpu.memory_space<vmem>>, vector<1x4x128xbf16>
    %3 = vector.shape_cast %2 : vector<1x4x128xbf16> to vector<4x128xbf16>
    %4 = tpu.concatenate %1, %3 in 1 : vector<4x256xbf16>, vector<4x128xbf16> -> vector<4x384xbf16>
    %c0_5 = arith.constant 0 : index
    %c0_6 = arith.constant 0 : index
    %5 = vector.load %arg4[%c0_5, %c0_6] : memref<72x4xbf16, #tpu.memory_space<vmem>>, vector<72x4xbf16>
    %cst = arith.constant dense<0.000000e+00> : vector<72x384xf32>
    %6 = tpu.matmul %5, %4, %cst {dimension_numbers = #tpu.dot_dimension_numbers<[1], [0], [0], [1], [0, 0, 1, 1], [], []>} : vector<72x4xbf16>, vector<4x384xbf16>, vector<72x384xf32> -> vector<72x384xf32>
    %7 = vector.extract_strided_slice %6 {offsets = [0, 0], sizes = [8, 384], strides = [1, 1]} : vector<72x384xf32> to vector<8x384xf32>
    %8 = vector.extract_strided_slice %7 {offsets = [0, 0], sizes = [8, 256], strides = [1, 1]} : vector<8x384xf32> to vector<8x256xf32>
    %c1_i32 = arith.constant 1 : i32
    %9 = tpu.dynamic_rotate %8 by %c1_i32 dim 1 : vector<8x256xf32>, i32 -> vector<8x256xf32>
    %10 = vector.extract_strided_slice %6 {offsets = [24, 0], sizes = [8, 384], strides = [1, 1]} : vector<72x384xf32> to vector<8x384xf32>
    %11 = vector.extract_strided_slice %10 {offsets = [0, 15], sizes = [8, 256], strides = [1, 1]} : vector<8x384xf32> to vector<8x256xf32>
    %12 = arith.addf %9, %11 : vector<8x256xf32>
    %13 = vector.extract_strided_slice %6 {offsets = [48, 0], sizes = [8, 384], strides = [1, 1]} : vector<72x384xf32> to vector<8x384xf32>
    %14 = vector.extract_strided_slice %13 {offsets = [0, 31], sizes = [8, 256], strides = [1, 1]} : vector<8x384xf32> to vector<8x256xf32>
    %15 = arith.addf %12, %14 : vector<8x256xf32>
    %16 = vector.extract_strided_slice %6 {offsets = [8, 0], sizes = [8, 384], strides = [1, 1]} : vector<72x384xf32> to vector<8x384xf32>
    %17 = vector.extract_strided_slice %16 {offsets = [0, 0], sizes = [8, 256], strides = [1, 1]} : vector<8x384xf32> to vector<8x256xf32>
    %18 = vector.extract_strided_slice %6 {offsets = [32, 0], sizes = [8, 384], strides = [1, 1]} : vector<72x384xf32> to vector<8x384xf32>
    %19 = vector.extract_strided_slice %18 {offsets = [0, 16], sizes = [8, 256], strides = [1, 1]} : vector<8x384xf32> to vector<8x256xf32>
    %20 = arith.addf %17, %19 : vector<8x256xf32>
    %21 = vector.extract_strided_slice %6 {offsets = [56, 0], sizes = [8, 384], strides = [1, 1]} : vector<72x384xf32> to vector<8x384xf32>
    %22 = vector.extract_strided_slice %21 {offsets = [0, 32], sizes = [8, 256], strides = [1, 1]} : vector<8x384xf32> to vector<8x256xf32>
    %23 = arith.addf %20, %22 : vector<8x256xf32>
    %24 = vector.extract_strided_slice %6 {offsets = [16, 0], sizes = [8, 384], strides = [1, 1]} : vector<72x384xf32> to vector<8x384xf32>
    %25 = vector.extract_strided_slice %24 {offsets = [0, 1], sizes = [8, 256], strides = [1, 1]} : vector<8x384xf32> to vector<8x256xf32>
    %26 = vector.extract_strided_slice %6 {offsets = [40, 0], sizes = [8, 384], strides = [1, 1]} : vector<72x384xf32> to vector<8x384xf32>
    %27 = vector.extract_strided_slice %26 {offsets = [0, 17], sizes = [8, 256], strides = [1, 1]} : vector<8x384xf32> to vector<8x256xf32>
    %28 = arith.addf %25, %27 : vector<8x256xf32>
    %29 = vector.extract_strided_slice %6 {offsets = [64, 0], sizes = [8, 384], strides = [1, 1]} : vector<72x384xf32> to vector<8x384xf32>
    %30 = vector.extract_strided_slice %29 {offsets = [0, 33], sizes = [8, 256], strides = [1, 1]} : vector<8x384xf32> to vector<8x256xf32>
    %31 = arith.addf %28, %30 : vector<8x256xf32>
    %32 = tpu.iota {dimensions = array<i32: 1>} : vector<1x256xi32>
    %c16_i32 = arith.constant 16 : i32
    %c0_i32 = arith.constant 0 : i32
    %33 = arith.cmpi eq, %c16_i32, %c0_i32 : i32
    %c1_i32_7 = arith.constant 1 : i32
    %34 = arith.select %33, %c1_i32_7, %c16_i32 : i32
    %35 = vector.broadcast %34 : i32 to vector<1x256xi32>
    %36 = arith.remsi %32, %35 : vector<1x256xi32>
    %c0_i32_8 = arith.constant 0 : i32
    %37 = vector.broadcast %c0_i32_8 : i32 to vector<1x256xi32>
    %38 = arith.cmpi ne, %36, %37 : vector<1x256xi32>
    %c0_i32_9 = arith.constant 0 : i32
    %39 = vector.broadcast %c0_i32_9 : i32 to vector<1x256xi32>
    %40 = arith.cmpi slt, %36, %39 : vector<1x256xi32>
    %c0_i32_10 = arith.constant 0 : i32
    %41 = arith.cmpi slt, %34, %c0_i32_10 : i32
    %42 = vector.broadcast %41 : i1 to vector<1x256xi1>
    %43 = vector.broadcast %42 : vector<1x256xi1> to vector<1x256xi1>
    %44 = arith.xori %40, %43 : vector<1x256xi1>
    %45 = arith.andi %44, %38 : vector<1x256xi1>
    %46 = vector.broadcast %34 : i32 to vector<1x256xi32>
    %47 = arith.addi %36, %46 : vector<1x256xi32>
    %48 = arith.select %45, %47, %36 : vector<1x256xi1>, vector<1x256xi32>
    %cst_11 = arith.constant 0.000000e+00 : f32
    %49 = vector.broadcast %cst_11 : f32 to vector<8x256xf32>
    %c0_i32_12 = arith.constant 0 : i32
    %50 = vector.broadcast %c0_i32_12 : i32 to vector<1x256xi32>
    %51 = arith.cmpi ne, %48, %50 : vector<1x256xi32>
    %52 = vector.shape_cast %51 : vector<1x256xi1> to vector<1x256xi1>
    %53 = vector.broadcast %52 : vector<1x256xi1> to vector<8x256xi1>
    %54 = arith.select %53, %15, %49 : vector<8x256xi1>, vector<8x256xf32>
    %c15_i32 = arith.constant 15 : i32
    %55 = vector.broadcast %c15_i32 : i32 to vector<1x256xi32>
    %56 = arith.cmpi ne, %48, %55 : vector<1x256xi32>
    %57 = vector.shape_cast %56 : vector<1x256xi1> to vector<1x256xi1>
    %58 = vector.broadcast %57 : vector<1x256xi1> to vector<8x256xi1>
    %59 = arith.select %58, %31, %49 : vector<8x256xi1>, vector<8x256xf32>
    %60 = arith.addf %54, %23 : vector<8x256xf32>
    %61 = arith.addf %60, %59 : vector<8x256xf32>
    %c0_13 = arith.constant 0 : index
    %c0_14 = arith.constant 0 : index
    %62 = vector.load %arg5[%c0_13, %c0_14] : memref<8x1xf32, #tpu.memory_space<vmem>>, vector<8x1xf32>
    %63 = vector.broadcast %62 : vector<8x1xf32> to vector<8x256xf32>
    %64 = arith.addf %61, %63 : vector<8x256xf32>
    %cst_15 = arith.constant 0.000000e+00 : f32
    %65 = vector.broadcast %cst_15 : f32 to vector<8x256xf32>
    %66 = arith.maximumf %64, %65 : vector<8x256xf32>
    %67 = arith.truncf %66 : vector<8x256xf32> to vector<8x256xbf16>
    %c0_16 = arith.constant 0 : index
    %c0_17 = arith.constant 0 : index
    %c0_18 = arith.constant 0 : index
    %68 = vector.load %arg6[%c0_16, %c0_17, %c0_18] : memref<1x8x256xbf16, #tpu.memory_space<vmem>>, vector<1x8x256xbf16>
    %69 = vector.shape_cast %68 : vector<1x8x256xbf16> to vector<8x256xbf16>
    %70 = vector.shape_cast %67 : vector<8x256xbf16> to vector<1x8x256xbf16>
    tpu.vector_store %arg6[%c0_16, %c0_17, %c0_18], %70 {strides = array<i32>} : memref<1x8x256xbf16, #tpu.memory_space<vmem>>, vector<1x8x256xbf16>,
    return
  }
  func.func @transform_0(%arg0: i32, %arg1: i32) -> (i32, i32, i32) {
    %c0_i32 = arith.constant 0 : i32
    %c0_i32_0 = arith.constant 0 : i32
    return %arg0, %c0_i32, %arg1 : i32, i32, i32
  }
  func.func @transform_1(%arg0: i32, %arg1: i32) -> (i32, i32, i32) {
    %c1_i32 = arith.constant 1 : i32
    %0 = arith.addi %arg1, %c1_i32 : i32
    %c2_i32 = arith.constant 2 : i32
    %1 = arith.muli %0, %c2_i32 : i32
    %c0_i32 = arith.constant 0 : i32
    %c0_i32_0 = arith.constant 0 : i32
    return %arg0, %c0_i32, %1 : i32, i32, i32
  }
  func.func @transform_2(%arg0: i32, %arg1: i32) -> (i32, i32) {
    %c0_i32 = arith.constant 0 : i32
    %c0_i32_0 = arith.constant 0 : i32
    %c0_i32_1 = arith.constant 0 : i32
    return %c0_i32, %c0_i32_0 : i32, i32
  }
  func.func @transform_3(%arg0: i32, %arg1: i32) -> (i32, i32) {
    %c0_i32 = arith.constant 0 : i32
    %c0_i32_0 = arith.constant 0 : i32
    %c0_i32_1 = arith.constant 0 : i32
    return %c0_i32, %c0_i32_0 : i32, i32
  }
  func.func @transform_4(%arg0: i32, %arg1: i32) -> (i32, i32, i32) {
    %c0_i32 = arith.constant 0 : i32
    %c0_i32_0 = arith.constant 0 : i32
    return %arg0, %c0_i32, %arg1 : i32, i32, i32
  }
}

</mosaic_0001>

<llo_original>
// kernel: _stem_conv3x3_relu.1
$region0: #{_stem_conv3x3_relu.1}
  #allocation0 [shape = 'u32[]', space=smem, size = 0x4, offset = 0x4, fixed_abs, tag = 'smem constant byte address 0x4 - core index']
  #allocation1 [shape = 'u32[144,128]{1,0:T(1,128)}', space=vmem, size = 0x12000, scoped, tag = 'internal scratch']
  %s0 = inlined_call_operand.vmem [shape: bf16[2,4,400], index: 0, kind: input, shape index: {}, may-alias: {0,1}]
  %s1 = inlined_call_operand.vmem [shape: bf16[2,4,400], index: 1, kind: input, shape index: {}, may-alias: {0,1}]
  %s2 = inlined_call_operand.vmem [shape: bf16[72,4], index: 2, kind: input, shape index: {}]
  %s3 = inlined_call_operand.vmem [shape: f32[8,1], index: 3, kind: input, shape index: {}]
  %s4 = inlined_call_operand.vmem [shape: bf16[2,8,256], index: 4, kind: output, shape index: {}]
  %s5 = sld [smem:[#allocation0]]
  $region49: #{_stem_conv3x3_relu.1} parent=0
    _
  %s7 = ssub.s32 1, %s5
  %s8 = scalar_select 0, %s7, %s5
  loop: start=0, step=1, limit=4
  $region2: #{_stem_conv3x3_relu.1} parent=0 // loop_pre_header
    _
  $region3: #{_stem_conv3x3_relu.1} parent=0 // loop_header
    %s10 = sphi 0, %s14
    %p11 = scmp.ge.s32.totalorder %s10, 4
    %s17 = sphi 0, %s29
    %s18 = sphi 0, %s25
    %s19 = sphi 0, %s17
    %s20 = sphi 0, %s18
    %s21 = sphi 0, %s19
    %s22 = sphi 0, %s20
    %s34 = sphi 0, %s36
    %s37 = sphi 0, %s34
    %s38 = sphi 0, %s37
    %s54 = sphi 0, %s38
    %s66 = sphi 0, %s68
    %s69 = sphi 0, %s66
    %s70 = sphi 0, %s69
    %s86 = sphi 0, %s70
    %s90 = sphi 0, %s90
    %s92 = sphi 0, %s90
    %s93 = sphi 0, %s92
    %s107 = sphi 0, %s93
    %s111 = sphi 0, %s111
    %s113 = sphi 0, %s111
    %s114 = sphi 0, %s113
    %s128 = sphi 0, %s114
    %s136 = sphi 0, %s138
    %s139 = sphi 0, %s136
    %s140 = sphi 0, %s139
    %s156 = sphi 0, %s140
  $region4: #{_stem_conv3x3_relu.1} parent=0 // loop_header_branch
    %13 = sbr.rel (%p11) target = $region8
  $region5: #{_stem_conv3x3_relu.1} parent=0 // loop_body
    %s15 = ssub.s32 %s10, 1
    %s16 = ssub.s32 %s10, 2
    %s23 = sadd.s32 1, %s18
    %p24 = scmp.ge.s32.totalorder %s23, 1
    %s25 = scalar_select %p24, 0, %s23
    %s26 = sadd.s32 1, %s17
    %s27 = scalar_select %p24, %s26, %s17
    %p28 = scmp.ge.s32.totalorder %s27, 2
    %s29 = scalar_select %p28, 0, %s27
    %s30 = ssub.s32 %s17, %s29
    %s31 = ssub.s32 %s18, %s25
    %s32 = sor.u32 %s30, %s31
    %p33 = scmp.eq.s32.totalorder %s32, 0
    %s35 = sadd.s32 %s34, 1
    %s36 = scalar_select %p33, %s34, %s35
    %p39 = pneg %p33
    %p40 = scmp.eq.s32.totalorder %s10, 1
    %p41 = por %p39, %p40
    %p42 = scmp.ne.s32.totalorder %s34, %s37
    %p43 = scmp.eq.s32.totalorder %s10, 0
    %p44 = por %p42, %p43
    %p45 = scmp.ne.s32.totalorder %s34, %s37
    %p46 = scmp.eq.s32.totalorder %s15, 1
    %p47 = por %p45, %p46
    %p48 = scmp.ne.s32.totalorder %s37, %s38
    %p49 = scmp.eq.s32.totalorder %s15, 0
    %p50 = por %p48, %p49
    %p51 = scmp.ne.s32.totalorder %s37, %s38
    %p52 = scmp.eq.s32.totalorder %s16, 1
    %p53 = por %p51, %p52
    %p55 = scmp.ne.s32.totalorder %s38, %s54
    %p56 = scmp.eq.s32.totalorder %s16, 0
    %p57 = por %p55, %p56
    %s58 = sadd.s32 %s18, 1
    %s59 = smul.u32 %s58, 2
    %s60 = sadd.s32 %s25, 1
    %s61 = smul.u32 %s60, 2
    %s62 = ssub.s32 %s17, %s29
    %s63 = ssub.s32 %s59, %s61
    %s64 = sor.u32 %s62, %s63
    %p65 = scmp.eq.s32.totalorder %s64, 0
    %s67 = sadd.s32 %s66, 1
    %s68 = scalar_select %p65, %s66, %s67
    %p71 = pneg %p65
    %p72 = scmp.eq.s32.totalorder %s10, 1
    %p73 = por %p71, %p72
    %p74 = scmp.ne.s32.totalorder %s66, %s69
    %p75 = scmp.eq.s32.totalorder %s10, 0
    %p76 = por %p74, %p75
    %p77 = scmp.ne.s32.totalorder %s66, %s69
    %p78 = scmp.eq.s32.totalorder %s15, 1
    %p79 = por %p77, %p78
    %p80 = scmp.ne.s32.totalorder %s69, %s70
    %p81 = scmp.eq.s32.totalorder %s15, 0
    %p82 = por %p80, %p81
    %p83 = scmp.ne.s32.totalorder %s69, %s70
    %p84 = scmp.eq.s32.totalorder %s16, 1
    %p85 = por %p83, %p84
    %p87 = scmp.ne.s32.totalorder %s70, %s86
    %p88 = scmp.eq.s32.totalorder %s16, 0
    %p89 = por %p87, %p88
    %s91 = sadd.s32 %s90, 1
    %p94 = scmp.eq.s32.totalorder %s10, 1
    %p95 = scmp.ne.s32.totalorder %s90, %s92
    %p96 = scmp.eq.s32.totalorder %s10, 0
    %p97 = por %p95, %p96
    %p98 = scmp.ne.s32.totalorder %s90, %s92
    %p99 = scmp.eq.s32.totalorder %s15, 1
    %p100 = por %p98, %p99
    %p101 = scmp.ne.s32.totalorder %s92, %s93
    %p102 = scmp.eq.s32.totalorder %s15, 0
    %p103 = por %p101, %p102
    %p104 = scmp.ne.s32.totalorder %s92, %s93
    %p105 = scmp.eq.s32.totalorder %s16, 1
    %p106 = por %p104, %p105
    %p108 = scmp.ne.s32.totalorder %s93, %s107
    %p109 = scmp.eq.s32.totalorder %s16, 0
    %p110 = por %p108, %p109
    %s112 = sadd.s32 %s111, 1
    %p115 = scmp.eq.s32.totalorder %s10, 1
    %p116 = scmp.ne.s32.totalorder %s111, %s113
    %p117 = scmp.eq.s32.totalorder %s10, 0
    %p118 = por %p116, %p117
    %p119 = scmp.ne.s32.totalorder %s111, %s113
    %p120 = scmp.eq.s32.totalorder %s15, 1
    %p121 = por %p119, %p120
    %p122 = scmp.ne.s32.totalorder %s113, %s114
    %p123 = scmp.eq.s32.totalorder %s15, 0
    %p124 = por %p122, %p123
    %p125 = scmp.ne.s32.totalorder %s113, %s114
    %p126 = scmp.eq.s32.totalorder %s16, 1
    %p127 = por %p125, %p126
    %p129 = scmp.ne.s32.totalorder %s114, %s128
    %p130 = scmp.eq.s32.totalorder %s16, 0
    %p131 = por %p129, %p130
    %s132 = ssub.s32 %s17, %s29
    %s133 = ssub.s32 %s18, %s25
    %s134 = sor.u32 %s132, %s133
    %p135 = scmp.eq.s32.totalorder %s134, 0
    %s137 = sadd.s32 %s136, 1
    %s138 = scalar_select %p135, %s136, %s137
    %p141 = pneg %p135
    %p142 = scmp.eq.s32.totalorder %s10, 1
    %p143 = por %p141, %p142
    %p144 = scmp.ne.s32.totalorder %s136, %s139
    %p145 = scmp.eq.s32.totalorder %s10, 0
    %p146 = por %p144, %p145
    %p147 = scmp.ne.s32.totalorder %s136, %s139
    %p148 = scmp.eq.s32.totalorder %s15, 1
    %p149 = por %p147, %p148
    %p150 = scmp.ne.s32.totalorder %s139, %s140
    %p151 = scmp.eq.s32.totalorder %s15, 0
    %p152 = por %p150, %p151
    %p153 = scmp.ne.s32.totalorder %s139, %s140
    %p154 = scmp.eq.s32.totalorder %s16, 1
    %p155 = por %p153, %p154
    %p157 = scmp.ne.s32.totalorder %s140, %s156
    %p158 = scmp.eq.s32.totalorder %s16, 0
    %p159 = por %p157, %p158
    %p160 = scmp.le.s32.totalorder 1, %s10
    %p161 = scmp.lt.s32.totalorder %s10, 3
    %p162 = pnand %p160, %p161
    %p163 = pneg %p162
    // Predicated region
    $region9: #{_stem_conv3x3_relu.1} parent=5 // pred_check
      _
    $region10: #{_stem_conv3x3_relu.1} parent=5 // pred_check_branch
      %165 = sbr.rel (%p162) target = $region12
    $region11: #{_stem_conv3x3_relu.1} parent=5 // pred_region
      %s166 = ssub.s32 %s10, 1
      // Predicated region
      $region13: #{_stem_conv3x3_relu.1} parent=11 // pred_check
        %p167 = pneg %p103
      $region14: #{_stem_conv3x3_relu.1} parent=11 // pred_check_branch
        %169 = sbr.rel (%p167) target = $region16
      $region15: #{_stem_conv3x3_relu.1} parent=11 // pred_region
        _
      $region16: #{_stem_conv3x3_relu.1} parent=11 // pred_fallthru
        _
      // Predicated region
      $region17: #{_stem_conv3x3_relu.1} parent=11 // pred_check
        %p170 = pneg %p124
      $region18: #{_stem_conv3x3_relu.1} parent=11 // pred_check_branch
        %172 = sbr.rel (%p170) target = $region20
      $region19: #{_stem_conv3x3_relu.1} parent=11 // pred_region
        _
      $region20: #{_stem_conv3x3_relu.1} parent=11 // pred_fallthru
        _
    $region12: #{_stem_conv3x3_relu.1} parent=5 // pred_fallthru
      _
    %p173 = scmp.lt.s32.totalorder %s10, 2
    // Predicated region
    $region21: #{_stem_conv3x3_relu.1} parent=5 // pred_check
      %p174 = pneg %p173
    $region22: #{_stem_conv3x3_relu.1} parent=5 // pred_check_branch
      %176 = sbr.rel (%p174) target = $region24
    $region23: #{_stem_conv3x3_relu.1} parent=5 // pred_region
      // Predicated region
      $region25: #{_stem_conv3x3_relu.1} parent=23 // pred_check
        %p177 = pneg %p44
      $region26: #{_stem_conv3x3_relu.1} parent=23 // pred_check_branch
        %179 = sbr.rel (%p177) target = $region28
      $region27: #{_stem_conv3x3_relu.1} parent=23 // pred_region
        %s180 = smul.u32 2, %s18
        %p181 = scmp.lt.s32.totalorder %s17, 1
        %s182 = scalar_select %p181, %s17, 1
        %p183 = scmp.lt.s32.totalorder %s180, 3
        %s184 = scalar_select %p183, %s180, 3
        %s185 = smul.addr %s182, 4
        %s186 = sadd.s32 %s184, %s185
        %s187 = smul.addr %s186, 2
        %s188 = scalar_lea.vmem %s0, %s187
        %s189 = smul.u32 2, %s18
      $region28: #{_stem_conv3x3_relu.1} parent=23 // pred_fallthru
        _
      // Predicated region
      $region29: #{_stem_conv3x3_relu.1} parent=23 // pred_check
        %p190 = pneg %p76
      $region30: #{_stem_conv3x3_relu.1} parent=23 // pred_check_branch
        %192 = sbr.rel (%p190) target = $region32
      $region31: #{_stem_conv3x3_relu.1} parent=23 // pred_region
        %s193 = sadd.s32 %s18, 1
        %s194 = smul.u32 %s193, 2
        %p195 = scmp.lt.s32.totalorder %s17, 1
        %s196 = scalar_select %p195, %s17, 1
        %p197 = scmp.lt.s32.totalorder %s194, 3
        %s198 = scalar_select %p197, %s194, 3
        %s199 = smul.addr %s196, 4
        %s200 = sadd.s32 %s198, %s199
        %s201 = smul.addr %s200, 2
        %s202 = scalar_lea.vmem %s1, %s201
        %s203 = sadd.s32 %s18, 1
        %s204 = smul.u32 %s203, 2
      $region32: #{_stem_conv3x3_relu.1} parent=23 // pred_fallthru
        _
    $region24: #{_stem_conv3x3_relu.1} parent=5 // pred_fallthru
      _
    %p205 = scmp.le.s32.totalorder 1, %s10
    %p206 = scmp.lt.s32.totalorder %s10, 3
    %p207 = pnand %p205, %p206
    %p208 = pneg %p207
    // Predicated region
    $region33: #{_stem_conv3x3_relu.1} parent=5 // pred_check
      _
    $region34: #{_stem_conv3x3_relu.1} parent=5 // pred_check_branch
      %210 = sbr.rel (%p207) target = $region36
    $region35: #{_stem_conv3x3_relu.1} parent=5 // pred_region
      %s211 = ssub.s32 %s10, 1
      %s212 = smul.u32 2, %s20
      %p213 = scmp.lt.s32.totalorder %s19, 1
      %s214 = scalar_select %p213, %s19, 1
      %p215 = scmp.lt.s32.totalorder %s212, 3
      %s216 = scalar_select %p215, %s212, 3
      %s217 = smul.addr %s214, 4
      %s218 = sadd.s32 %s216, %s217
      %s219 = smul.addr %s218, 2
      %s220 = scalar_lea.vmem %s0, %s219
      %p221 = pneg %p50
      %p222 = pneg %p47
      %s223 = sadd.s32 %s20, 1
      %s224 = smul.u32 %s223, 2
      %p225 = scmp.lt.s32.totalorder %s19, 1
      %s226 = scalar_select %p225, %s19, 1
      %p227 = scmp.lt.s32.totalorder %s224, 3
      %s228 = scalar_select %p227, %s224, 3
      %s229 = smul.addr %s226, 4
      %s230 = sadd.s32 %s228, %s229
      %s231 = smul.addr %s230, 2
      %s232 = scalar_lea.vmem %s1, %s231
      %p233 = pneg %p82
      %p234 = pneg %p79
      %p235 = pneg %p103
      %p236 = pneg %p100
      %p237 = pneg %p124
      %p238 = pneg %p121
      %p239 = pneg %p152
      %p240 = pneg %p149
      %s241 = smul.u32 2, %s20
      %p242 = scmp.lt.s32.totalorder %s19, 1
      %s243 = scalar_select %p242, %s19, 1
      %p244 = scmp.lt.s32.totalorder %s241, 1
      %s245 = scalar_select %p244, %s241, 1
      %s246 = smul.addr %s243, 2
      %s247 = sadd.s32 %s245, %s246
      %s248 = smul.addr %s247, 4
      %s249 = scalar_lea.vmem %s4, %s248
      %s250 = smul.u32 2, %s20
      %p251 = scmp.lt.s32.totalorder %s19, 1
      %s252 = scalar_select %p251, %s19, 1
      %p253 = scmp.lt.s32.totalorder %s250, 3
      %s254 = scalar_select %p253, %s250, 3
      %s255 = smul.addr %s252, 4
      %s256 = sadd.s32 %s254, %s255
      %s257 = smul.addr %s256, 2
      %s258 = scalar_lea.vmem %s0, %s257
      %s259 = smul.u32 2, %s20
      %s260 = sadd.s32 %s20, 1
      %s261 = smul.u32 %s260, 2
      %p262 = scmp.lt.s32.totalorder %s19, 1
      %s263 = scalar_select %p262, %s19, 1
      %p264 = scmp.lt.s32.totalorder %s261, 3
      %s265 = scalar_select %p264, %s261, 3
      %s266 = smul.addr %s263, 4
      %s267 = sadd.s32 %s265, %s266
      %s268 = smul.addr %s267, 2
      %s269 = scalar_lea.vmem %s1, %s268
      %s270 = sadd.s32 %s20, 1
      %s271 = smul.u32 %s270, 2
      %s272 = smul.u32 2, %s20
      %p273 = scmp.lt.s32.totalorder %s19, 1
      %s274 = scalar_select %p273, %s19, 1
      %p275 = scmp.lt.s32.totalorder %s272, 1
      %s276 = scalar_select %p275, %s272, 1
      %s277 = smul.addr %s274, 2
      %s278 = sadd.s32 %s276, %s277
      %s279 = smul.addr %s278, 4
      %s280 = scalar_lea.vmem %s4, %s279
      %s281 = smul.u32 2, %s20
      %v283 = vld [vmem:[%s258] sm:$0xf]
      %v284 = vld [vmem:[%s269] sm:$0x3]
      %v287 = vunpack.c.l.s4 1983009808
      %v288 = vunpack.c.0.s8 %v287
      %v289 = vlaneseq
      %v290 = vshrl.u32 %v289, 7
      %v291 = vsub.s32 %v288, %v290
      %v292 = vrot.slane %v283, %v291
      %v293 = vcombine.high %v292, %v292
      %v294 = vld [vmem:[%s2] sm:$0xf]
      %v295 = vld [vmem:[%s2 + $0x4] sm:$0xf]
      %v296 = vld [vmem:[%s2 + $0x8] sm:$0xf]
      %v297 = vld [vmem:[%s2 + $0xc] sm:$0xf]
      %v298 = vld [vmem:[%s2 + $0x10] sm:$0xf]
      %v299 = vld [vmem:[%s2 + $0x14] sm:$0xf]
      %v300 = vld [vmem:[%s2 + $0x18] sm:$0xf]
      %v301 = vld [vmem:[%s2 + $0x1c] sm:$0xf]
      %v302 = vld [vmem:[%s2 + $0x20] sm:$0xf]
      %v312 = vunpack.c.l.b16 %v294
      %v313 = vunpack.c.l.b16 %v295
      %v314 = vunpack.c.l.b16 %v296
      %v315 = vunpack.c.l.b16 %v297
      %v316 = vunpack.c.l.b16 %v298
      %v317 = vunpack.c.l.b16 %v299
      %v318 = vunpack.c.l.b16 %v300
      %v319 = vunpack.c.l.b16 %v301
      %v320 = vunpack.c.l.b16 %v302
      %v321 = vpack.c.b16 %v313, %v312
      %v322 = vpack.c.b16 %v315, %v314
      %v323 = vpack.c.b16 %v317, %v316
      %v324 = vpack.c.b16 %v319, %v318
      %v325 = vpack.c.b16 %v320, %v320
      %vm326 = vcmask 31744
      %v328 = vsel %vm326, %v321, 0
      %v331 = vsel %vm326, %v322, 0
      %v334 = vsel %vm326, %v323, 0
      %v337 = vsel %vm326, %v324, 0
      %v340 = vsel %vm326, %v325, 0
      %vm342 = vcmask 1041408
      %v344 = vsel %vm342, %v292, 0
      %v347 = vsel %vm342, %v293, 0
      %v350 = vsel %vm342, %v284, 0
      %352 = vmatprep.subr.bf16.mxu0 %v347
      %353 = vmatpush1.bf16.msra.mxu0 %v344
      %354 = vmatprep.subr.bf16.mxu0 0
      %355 = vmatpush1.bf16.msra.mxu0 0
      %356 = vmatprep.subr.bf16.mxu0 0
      %357 = vmatpush1.bf16.msra.mxu0 0
      %358 = vmatprep.subr.bf16.mxu0 0
      %359 = vmatpush1.bf16.msra.mxu0 0
      %360 = vmatprep.subr.bf16.mxu0 0
      %361 = vmatpush1.bf16.msra.mxu0 0
      %362 = vmatprep.subr.bf16.mxu0 0
      %363 = vmatpush1.bf16.msra.mxu0 0
      %364 = vmatprep.subr.bf16.mxu0 0
      %365 = vmatpush1.bf16.msra.mxu0 0
      %366 = vmatprep.subr.bf16.mxu0 0
      %367 = vmatpush1.bf16.msra.mxu0 0
      %368 = vmatprep.subr.bf16.mxu0 0
      %369 = vmatpush1.bf16.msra.mxu0 0
      %370 = vmatprep.subr.bf16.mxu0 0
      %371 = vmatpush1.bf16.msra.mxu0 0
      %372 = vmatprep.subr.bf16.mxu0 0
      %373 = vmatpush1.bf16.msra.mxu0 0
      %374 = vmatprep.subr.bf16.mxu0 0
      %375 = vmatpush1.bf16.msra.mxu0 0
      %376 = vmatprep.subr.bf16.mxu0 0
      %377 = vmatpush1.bf16.msra.mxu0 0
      %378 = vmatprep.subr.bf16.mxu0 0
      %379 = vmatpush1.bf16.msra.mxu0 0
      %380 = vmatprep.subr.bf16.mxu0 0
      %381 = vmatpush1.bf16.msra.mxu0 0
      %382 = vmatprep.subr.bf16.mxu0 0
      %383 = vmatpush1.bf16.msra.mxu0 0
      %384 = vmatprep.mubr.bf16.mxu0 0
      %385 = vmatmul.mubr.bf16.gmra.mrb[0].mxu0 %v328
      %v386 = vpop.f32.mrb[0].mxu0
      %v387 = vadd.f32 0.0, %v386
      %v388 = vpop.f32.mrb[0].mxu0
      %v389 = vadd.f32 0.0, %v388
      %v390 = vpop.f32.mrb[0].mxu0
      %v391 = vadd.f32 0.0, %v390
      %v392 = vpop.f32.mrb[0].mxu0
      %v393 = vadd.f32 0.0, %v392
      %394 = vmatprep.mubr.bf16.mxu0 0
      %395 = vmatmul.mubr.bf16.gmra.mrb[0].mxu0 %v331
      %v396 = vpop.f32.mrb[0].mxu0
      %v397 = vadd.f32 0.0, %v396
      %v398 = vpop.f32.mrb[0].mxu0
      %v399 = vadd.f32 0.0, %v398
      %v400 = vpop.f32.mrb[0].mxu0
      %v401 = vadd.f32 0.0, %v400
      %v402 = vpop.f32.mrb[0].mxu0
      %v403 = vadd.f32 0.0, %v402
      %404 = vmatprep.mubr.bf16.mxu0 0
      %405 = vmatmul.mubr.bf16.gmra.mrb[0].mxu0 %v334
      %v406 = vpop.f32.mrb[0].mxu0
      %v407 = vadd.f32 0.0, %v406
      %v408 = vpop.f32.mrb[0].mxu0
      %v409 = vadd.f32 0.0, %v408
      %v410 = vpop.f32.mrb[0].mxu0
      %v411 = vadd.f32 0.0, %v410
      %v412 = vpop.f32.mrb[0].mxu0
      %v413 = vadd.f32 0.0, %v412
      %414 = vmatprep.mubr.bf16.mxu0 0
      %415 = vmatmul.mubr.bf16.gmra.mrb[0].mxu0 %v337
      %v416 = vpop.f32.mrb[0].mxu0
      %v417 = vadd.f32 0.0, %v416
      %v418 = vpop.f32.mrb[0].mxu0
      %v419 = vadd.f32 0.0, %v418
      %v420 = vpop.f32.mrb[0].mxu0
      %v421 = vadd.f32 0.0, %v420
      %v422 = vpop.f32.mrb[0].mxu0
      %v423 = vadd.f32 0.0, %v422
      %424 = vmatprep.mubr.bf16.mxu0 0
      %425 = vmatmul.mubr.bf16.gmra.mrb[0].mxu0 %v340
      %v426 = vpop.f32.mrb[0].mxu0
      %v427 = vadd.f32 0.0, %v426
      %v428 = vpop.f32.mrb[0].mxu0
      %v429 = vadd.f32 0.0, %v428
      %v430 = vpop.f32.mrb[0].mxu0
      %v431 = vpop.f32.mrb[0].mxu0
      %432 = vdwg.mxu0
      %433 = vmatprep.subr.bf16.mxu0 0
      %434 = vmatpush1.bf16.msra.mxu0 %v350
      %435 = vmatprep.subr.bf16.mxu0 0
      %436 = vmatpush1.bf16.msra.mxu0 0
      %437 = vmatprep.subr.bf16.mxu0 0
      %438 = vmatpush1.bf16.msra.mxu0 0
      %439 = vmatprep.subr.bf16.mxu0 0
      %440 = vmatpush1.bf16.msra.mxu0 0
      %441 = vmatprep.subr.bf16.mxu0 0
      %442 = vmatpush1.bf16.msra.mxu0 0
      %443 = vmatprep.subr.bf16.mxu0 0
      %444 = vmatpush1.bf16.msra.mxu0 0
      %445 = vmatprep.subr.bf16.mxu0 0
      %446 = vmatpush1.bf16.msra.mxu0 0
      %447 = vmatprep.subr.bf16.mxu0 0
      %448 = vmatpush1.bf16.msra.mxu0 0
      %449 = vmatprep.subr.bf16.mxu0 0
      %450 = vmatpush1.bf16.msra.mxu0 0
      %451 = vmatprep.subr.bf16.mxu0 0
      %452 = vmatpush1.bf16.msra.mxu0 0
      %453 = vmatprep.subr.bf16.mxu0 0
      %454 = vmatpush1.bf16.msra.mxu0 0
      %455 = vmatprep.subr.bf16.mxu0 0
      %456 = vmatpush1.bf16.msra.mxu0 0
      %457 = vmatprep.subr.bf16.mxu0 0
      %458 = vmatpush1.bf16.msra.mxu0 0
      %459 = vmatprep.subr.bf16.mxu0 0
      %460 = vmatpush1.bf16.msra.mxu0 0
      %461 = vmatprep.subr.bf16.mxu0 0
      %462 = vmatpush1.bf16.msra.mxu0 0
      %463 = vmatprep.subr.bf16.mxu0 0
      %464 = vmatpush1.bf16.msra.mxu0 0
      %465 = vmatprep.mubr.bf16.mxu0 0
      %466 = vmatmul.mubr.bf16.gmra.mrb[0].mxu0 %v328
      %v467 = vpop.f32.mrb[0].mxu0
      %v468 = vpop.f32.mrb[0].mxu0
      %v469 = vpop.f32.mrb[0].mxu0
      %v470 = vpop.f32.mrb[0].mxu0
      %471 = vmatprep.mubr.bf16.mxu0 0
      %472 = vmatmul.mubr.bf16.gmra.mrb[0].mxu0 %v331
      %v473 = vpop.f32.mrb[0].mxu0
      %v474 = vadd.f32 0.0, %v473
      %v475 = vpop.f32.mrb[0].mxu0
      %v476 = vpop.f32.mrb[0].mxu0
      %v477 = vadd.f32 0.0, %v476
      %v478 = vpop.f32.mrb[0].mxu0
      %479 = vmatprep.mubr.bf16.mxu0 0
      %480 = vmatmul.mubr.bf16.gmra.mrb[0].mxu0 %v334
      %v481 = vpop.f32.mrb[0].mxu0
      %v482 = vadd.f32 0.0, %v481
      %v483 = vpop.f32.mrb[0].mxu0
      %v484 = vpop.f32.mrb[0].mxu0
      %v485 = vadd.f32 0.0, %v484
      %v486 = vpop.f32.mrb[0].mxu0
      %487 = vmatprep.mubr.bf16.mxu0 0
      %488 = vmatmul.mubr.bf16.gmra.mrb[0].mxu0 %v337
      %v489 = vpop.f32.mrb[0].mxu0
      %v490 = vadd.f32 0.0, %v489
      %v491 = vpop.f32.mrb[0].mxu0
      %v492 = vpop.f32.mrb[0].mxu0
      %v493 = vadd.f32 0.0, %v492
      %v494 = vpop.f32.mrb[0].mxu0
      %495 = vmatprep.mubr.bf16.mxu0 0
      %496 = vmatmul.mubr.bf16.gmra.mrb[0].mxu0 %v340
      %v497 = vpop.f32.mrb[0].mxu0
      %v498 = vadd.f32 0.0, %v497
      %v499 = vpop.f32.mrb[0].mxu0
      %v500 = vpop.f32.mrb[0].mxu0
      %v501 = vpop.f32.mrb[0].mxu0
      %502 = vdwg.mxu0
      %503 = vrot.lane.b32.xlu0 %v387, 1
      %v504 = vpop.permute.xlu0 %503
      %505 = vrot.lane.b32.xlu0 %v389, 1
      %v506 = vpop.permute.xlu0 %505
      %v507 = vlaneseq
      %v508 = vand.u32 %v507, 127
      %vm509 = vcmp.lt.s32.totalorder %v508, 1
      %v510 = vsel %vm509, %v504, %v506
      %v511 = vsel %vm509, %v506, %v504
      %515 = vrot.lane.b32.xlu0 %v401, 113
      %v516 = vpop.permute.xlu0 %515
      %517 = vrot.lane.b32.xlu0 %v403, 113
      %v518 = vpop.permute.xlu0 %517
      %519 = vrot.lane.b32.xlu0 %v477, 113
      %v520 = vpop.permute.xlu0 %519
      %vm521 = vcmask 924672
      %v522 = vsel %vm521, %v516, %v518
      %v523 = vsel %vm521, %v518, %v520
      %v526 = vadd.f32 %v511, %v522
      %v527 = vadd.f32 %v510, %v523
      %531 = vrot.lane.b32.xlu0 %v417, 97
      %v532 = vpop.permute.xlu0 %531
      %533 = vrot.lane.b32.xlu0 %v419, 97
      %v534 = vpop.permute.xlu0 %533
      %535 = vrot.lane.b32.xlu0 %v490, 97
      %v536 = vpop.permute.xlu0 %535
      %vm537 = vcmask 793600
      %v538 = vsel %vm537, %v532, %v534
      %v539 = vsel %vm537, %v534, %v536
      %v542 = vadd.f32 %v526, %v538
      %v543 = vadd.f32 %v527, %v539
      %547 = vrot.lane.b32.xlu0 %v407, 112
      %v548 = vpop.permute.xlu0 %547
      %549 = vrot.lane.b32.xlu0 %v409, 112
      %v550 = vpop.permute.xlu0 %549
      %551 = vrot.lane.b32.xlu0 %v482, 112
      %v552 = vpop.permute.xlu0 %551
      %vm553 = vcmask 916480
      %v554 = vsel %vm553, %v548, %v550
      %v555 = vsel %vm553, %v550, %v552
      %v558 = vadd.f32 %v391, %v554
      %v559 = vadd.f32 %v393, %v555
      %563 = vrot.lane.b32.xlu0 %v421, 96
      %v564 = vpop.permute.xlu0 %563
      %565 = vrot.lane.b32.xlu0 %v423, 96
      %v566 = vpop.permute.xlu0 %565
      %567 = vrot.lane.b32.xlu0 %v493, 96
      %v568 = vpop.permute.xlu0 %567
      %vm569 = vcmask 785408
      %v570 = vsel %vm569, %v564, %v566
      %v571 = vsel %vm569, %v566, %v568
      %v574 = vadd.f32 %v558, %v570
      %v575 = vadd.f32 %v559, %v571
      %579 = vrot.lane.b32.xlu0 %v411, 112
      %v580 = vpop.permute.xlu0 %579
      %581 = vrot.lane.b32.xlu0 %v413, 112
      %v582 = vpop.permute.xlu0 %581
      %583 = vrot.lane.b32.xlu0 %v485, 112
      %v584 = vpop.permute.xlu0 %583
      %v585 = vsel %vm553, %v580, %v582
      %v586 = vsel %vm553, %v582, %v584
      %v590 = vadd.f32 %v397, %v585
      %v591 = vadd.f32 %v399, %v586
      %v592 = vadd.f32 %v474, %v584
      %596 = vrot.lane.b32.xlu0 %v427, 96
      %v597 = vpop.permute.xlu0 %596
      %598 = vrot.lane.b32.xlu0 %v429, 96
      %v599 = vpop.permute.xlu0 %598
      %600 = vrot.lane.b32.xlu0 %v498, 96
      %v601 = vpop.permute.xlu0 %600
      %v602 = vsel %vm569, %v597, %v599
      %v603 = vsel %vm569, %v599, %v601
      %v607 = vadd.f32 %v590, %v602
      %v608 = vadd.f32 %v591, %v603
      %v609 = vadd.f32 %v592, %v601
      %v610 = vadd.s32 %v508, 128
      %vm611 = vcmp.lt.s32.totalorder %v508, 0
      %v612 = vsub.s32 0, %v508
      %v613 = vsel %vm611, %v612, %v508
      %v614 = vshrl.u32 %v613, 4
      %v615 = vand.u32 %v613, 15
      %v616 = vsub.s32 0, %v615
      %v617 = vsel %vm611, %v616, %v615
      %vm618 = vcmp.lt.s32.totalorder %v610, 0
      %v619 = vsub.s32 0, %v610
      %v620 = vsel %vm618, %v619, %v610
      %v621 = vshrl.u32 %v620, 4
      %v622 = vand.u32 %v620, 15
      %v623 = vsub.s32 0, %v622
      %v624 = vsel %vm618, %v623, %v622
      %vm625 = vcmp.ne.s32.totalorder %v617, 0
      %vm626 = vcmp.ne.s32.totalorder %v624, 0
      %vm627 = vcmp.lt.s32.totalorder %v617, 0
      %vm628 = vcmp.lt.s32.totalorder %v624, 0
      %vm629 = vmand %vm627, %vm625
      %vm630 = vmand %vm628, %vm626
      %v631 = vadd.s32 %v617, 16
      %v632 = vadd.s32 %v624, 16
      %v633 = vsel %vm629, %v631, %v617
      %v634 = vsel %vm630, %v632, %v624
      %vm635 = vcmp.ne.s32.totalorder %v633, 0
      %vm636 = vcmp.ne.s32.totalorder %v634, 0
      %v637 = vsel %vm635, 1, 0
      %v638 = vsel %vm636, 1, 0
      %vm639 = vcmp.eq.s32.totalorder %v637, 1
      %vm640 = vcmp.eq.s32.totalorder %v638, 1
      %v641 = vsel %vm639, %v542, 0.0
      %v642 = vsel %vm640, %v543, 0.0
      %vm643 = vcmp.ne.s32.totalorder %v633, 15
      %vm644 = vcmp.ne.s32.totalorder %v634, 15
      %v645 = vsel %vm643, 1, 0
      %v646 = vsel %vm644, 1, 0
      %vm647 = vcmp.eq.s32.totalorder %v645, 1
      %vm648 = vcmp.eq.s32.totalorder %v646, 1
      %652 = vrot.lane.b32.xlu0 %v607, 127
      %v653 = vpop.permute.xlu0 %652
      %654 = vrot.lane.b32.xlu0 %v608, 127
      %v655 = vpop.permute.xlu0 %654
      %656 = vrot.lane.b32.xlu0 %v609, 127
      %v657 = vpop.permute.xlu0 %656
      %vm658 = vcmask 1039360
      %v659 = vsel %vm658, %v653, %v655
      %v660 = vsel %vm658, %v655, %v657
      %v663 = vsel %vm647, %v659, 0.0
      %v664 = vsel %vm648, %v660, 0.0
      %v665 = vadd.f32 %v641, %v574
      %v666 = vadd.f32 %v642, %v575
      %v667 = vadd.f32 %v665, %v663
      %v668 = vadd.f32 %v666, %v664
      %v669 = vld [vmem:[%s3] sm:$0xff]
      %671 = vset.pattern.permute.xlu0 0
      %672 = vperm.xlu0 %671, %v669
      %v673 = vpop.permute.xlu0 %672
      %v675 = vadd.f32 %v667, %v673
      %v676 = vadd.f32 %v668, %v673
      %v677 = vmax.f32 %v675, 0.0
      %v678 = vmax.f32 %v676, 0.0
      %v679 = vpack.c.bf16 %v677, %v677
      %v680 = vpack.c.bf16 %v678, %v678
      %v683 = vunpack.c.l.b16 %v679
      %v684 = vunpack.c.l.b16 %v680
      %v685 = vpack.c.b16 %v684, %v683
      %687 = vst [vmem:[%s280] sm:$0xff] %v685
      %s688 = smul.u32 2, %s20
      %p689 = scmp.lt.s32.totalorder %s19, 1
      %s690 = scalar_select %p689, %s19, 1
      %p691 = scmp.lt.s32.totalorder %s688, 1
      %s692 = scalar_select %p691, %s688, 1
      %s693 = smul.addr %s690, 2
      %s694 = sadd.s32 %s692, %s693
      %s695 = smul.addr %s694, 4
      %s696 = scalar_lea.vmem %s4, %s695
      // Predicated region
      $region37: #{_stem_conv3x3_relu.1} parent=35 // pred_check
        %p697 = pneg %p149
      $region38: #{_stem_conv3x3_relu.1} parent=35 // pred_check_branch
        %699 = sbr.rel (%p697) target = $region40
      $region39: #{_stem_conv3x3_relu.1} parent=35 // pred_region
        %s700 = smul.u32 2, %s20
      $region40: #{_stem_conv3x3_relu.1} parent=35 // pred_fallthru
        _
    $region36: #{_stem_conv3x3_relu.1} parent=5 // pred_fallthru
      _
    %p701 = scmp.le.s32.totalorder 2, %s10
    // Predicated region
    $region41: #{_stem_conv3x3_relu.1} parent=5 // pred_check
      %p702 = pneg %p701
    $region42: #{_stem_conv3x3_relu.1} parent=5 // pred_check_branch
      %704 = sbr.rel (%p702) target = $region44
    $region43: #{_stem_conv3x3_relu.1} parent=5 // pred_region
      %s705 = ssub.s32 %s10, 2
      // Predicated region
      $region45: #{_stem_conv3x3_relu.1} parent=43 // pred_check
        %p706 = pneg %p155
      $region46: #{_stem_conv3x3_relu.1} parent=43 // pred_check_branch
        %708 = sbr.rel (%p706) target = $region48
      $region47: #{_stem_conv3x3_relu.1} parent=43 // pred_region
        %s709 = smul.u32 2, %s22
        %p710 = scmp.lt.s32.totalorder %s21, 1
        %s711 = scalar_select %p710, %s21, 1
        %p712 = scmp.lt.s32.totalorder %s709, 1
        %s713 = scalar_select %p712, %s709, 1
        %s714 = smul.addr %s711, 2
        %s715 = sadd.s32 %s713, %s714
        %s716 = smul.addr %s715, 4
        %s717 = scalar_lea.vmem %s4, %s716
      $region48: #{_stem_conv3x3_relu.1} parent=43 // pred_fallthru
        _
    $region44: #{_stem_conv3x3_relu.1} parent=5 // pred_fallthru
      _
  $region6: #{_stem_conv3x3_relu.1} parent=0 // loop_footer
    %s14 = sadd.s32 1, %s10
  $region7: #{_stem_conv3x3_relu.1} parent=0 // loop_footer_branch
    %9 = sbr.rel target = $region3
  $region8: #{_stem_conv3x3_relu.1} parent=0 // loop_exit
    _

</llo_original>
